<compile_context>
chip_gen: v5e
topology: v5e:2x2
jax: 0.10.0
libtpu: 0.0.40
codegen_flags: <defaults>
</compile_context>

<pallas_src>
import jax
import jax.numpy as jnp
from jax.experimental import pallas as pl
from jax.experimental.pallas import tpu as pltpu


def _round_up(x, m):
    return ((x + m - 1) // m) * m


def _tagger_kernel(ids_ref, wcomb_ref, b_ref, wo_ref, bo_ref, out_ref):
    Sb = ids_ref.shape[0]           # rows in this block
    V = wcomb_ref.shape[0]          # vocab size
    G3 = wcomb_ref.shape[1]         # 3 * G (three lane-aligned gate groups)
    G = G3 // 3

    # ---- embedding gather fused with gate projection: one MXU op ----
    ids = ids_ref[...]                                             # (Sb, 1) int32
    eq = ids == jax.lax.broadcasted_iota(jnp.int32, (Sb, V), 1)    # (Sb, V) bool
    onehot = eq.astype(jnp.float32).astype(wcomb_ref.dtype)        # exact 0/1 in bf16

    # dropout on the embedding: identity (eval mode); folding table@W is exact.
    gates = jnp.dot(onehot, wcomb_ref[...],
                    preferred_element_type=jnp.float32) + b_ref[...]   # (Sb, 3G) f32

    # ---- fused bidirectional single-step LSTM (h0 = c0 = 0) ----
    # each slice below starts at a 128-lane boundary (vreg-aligned)
    i_gate = jax.nn.sigmoid(gates[:, 0 * G:1 * G])    # [i_f, i_b, pad]
    o_gate = jax.nn.sigmoid(gates[:, 1 * G:2 * G])    # [o_f, o_b, pad]
    g_act = jnp.tanh(gates[:, 2 * G:3 * G])           # [g_f, g_b, pad]

    c = i_gate * g_act               # forget-gate term is exactly 0, dropped
    h = o_gate * jnp.tanh(c)         # (Sb, G); lanes [0:2H] = concat(h_f, h_b), pad lanes = 0

    # dropout on hidden: identity (eval mode)

    # ---- output projection (lane-padded to 128 tags, lane-dense store) ----
    out = jnp.dot(h.astype(wo_ref.dtype), wo_ref[...],
                  preferred_element_type=jnp.float32) + bo_ref[...]    # (Sb, T_pad)
    out_ref[...] = out.astype(out_ref.dtype)


def prepare_kernel_params(params, *, rnn_size, num_tags):
    """One-time host-side weight re-layout for the fused kernel."""
    H = rnn_size
    E = params["embedding"].shape[1]
    G = _round_up(2 * H, 128)          # lane-aligned gate-group width
    T_pad = _round_up(num_tags, 128)

    bf = params["b_ih_f"] + params["b_hh_f"]     # (4H,) PyTorch gate order i,f,g,o
    bb = params["b_ih_b"] + params["b_hh_b"]
    wf = params["w_ih_f"]                        # (4H, E)
    wb = params["w_ih_b"]

    def wgroup(lo, hi):
        g = jnp.zeros((E, G), jnp.float32)
        g = g.at[:, 0:H].set(wf[lo:hi].T)        # forward direction -> lanes [0:H]
        g = g.at[:, H:2 * H].set(wb[lo:hi].T)    # backward direction -> lanes [H:2H]
        return g

    def bgroup(lo, hi):
        v = jnp.zeros((G,), jnp.float32)
        v = v.at[0:H].set(bf[lo:hi]).at[H:2 * H].set(bb[lo:hi])
        return v

    # gate-group order: [i | o | g]   (forget gate dropped -- exact since c0 = 0)
    w_fused = jnp.concatenate(
        [wgroup(0 * H, 1 * H), wgroup(3 * H, 4 * H), wgroup(2 * H, 3 * H)],
        axis=1)                                                     # (E, 3G) f32
    b_fused = jnp.concatenate(
        [bgroup(0 * H, 1 * H), bgroup(3 * H, 4 * H), bgroup(2 * H, 3 * H)]
    ).reshape(1, 3 * G)                                             # (1, 3G) f32

    # Fold embedding lookup into the gate projection (exact: dropout is identity):
    #   gates = onehot @ (table @ w_fused) + b
    w_comb = (params["embedding"].astype(jnp.float32) @ w_fused
              ).astype(jnp.bfloat16)                                # (V, 3G) bf16

    wo = jnp.zeros((G, T_pad), jnp.float32)
    wo = wo.at[0:2 * H, 0:num_tags].set(params["w_out"].T)          # rows = [fwd | bwd | 0-pad]
    bo = jnp.zeros((1, T_pad), jnp.float32).at[0, 0:num_tags].set(
        params["b_out"].astype(jnp.float32))

    return {
        "w_comb": w_comb,                       # bf16 (V, 3G)
        "b_fused": b_fused,                     # f32  (1, 3G)
        "wo": wo.astype(jnp.bfloat16),          # bf16 (G, T_pad)
        "bo": bo,                               # f32  (1, T_pad)
    }


def tagger_forward(word_ids, kparams, *, rnn_size, num_tags):
    S = int(word_ids.shape[0])
    V, G3 = kparams["w_comb"].shape
    G = G3 // 3
    T_pad = kparams["wo"].shape[1]

    # Row tiling:
    #  * small S: a single block (no per-step overhead),
    #  * S >= MIN_SPLIT: at least 2 grid steps so ("parallel",) can shard rows
    #    across v7x's 2 TensorCores, capped at ROW_BLOCK rows to bound VMEM.
    ROW_BLOCK = 1024
    MIN_SPLIT = 256
    if S < MIN_SPLIT:
        row_block = _round_up(max(S, 1), 8)
    else:
        row_block = min(ROW_BLOCK, _round_up(pl.cdiv(S, 2), 8))
    S_pad = _round_up(S, row_block)
    grid = (S_pad // row_block,)

    ids = jnp.zeros((S_pad, 1), jnp.int32).at[:S, 0].set(word_ids.astype(jnp.int32))

    out = pl.pallas_call(
        _tagger_kernel,
        out_shape=jax.ShapeDtypeStruct((S_pad, T_pad), jnp.float32),
        grid=grid,
        in_specs=[
            pl.BlockSpec((row_block, 1), lambda i: (i, 0)),   # word ids (rows)
            pl.BlockSpec((V, G3), lambda i: (0, 0)),          # combined table@gate weights
            pl.BlockSpec((1, G3), lambda i: (0, 0)),          # fused gate bias
            pl.BlockSpec((G, T_pad), lambda i: (0, 0)),       # output weights
            pl.BlockSpec((1, T_pad), lambda i: (0, 0)),       # output bias
        ],
        out_specs=pl.BlockSpec((row_block, T_pad), lambda i: (i, 0)),
        compiler_params=pltpu.CompilerParams(
            dimension_semantics=("parallel",),
            vmem_limit_bytes=32 * 1024 * 1024),
    )(ids, kparams["w_comb"], kparams["b_fused"], kparams["wo"], kparams["bo"])

    return out[:S, :num_tags]


def make_params(key, num_words, num_tags, emb_size, rnn_size):
    ks = jax.random.split(key, 9)
    scale = 0.1
    return {
        "embedding": scale * jax.random.normal(ks[0], (num_words, emb_size), jnp.float32),
        "w_ih_f": scale * jax.random.normal(ks[1], (4 * rnn_size, emb_size), jnp.float32),
        "b_ih_f": scale * jax.random.normal(ks[2], (4 * rnn_size,), jnp.float32),
        "b_hh_f": scale * jax.random.normal(ks[3], (4 * rnn_size,), jnp.float32),
        "w_ih_b": scale * jax.random.normal(ks[4], (4 * rnn_size, emb_size), jnp.float32),
        "b_ih_b": scale * jax.random.normal(ks[5], (4 * rnn_size,), jnp.float32),
        "b_hh_b": scale * jax.random.normal(ks[6], (4 * rnn_size,), jnp.float32),
        "w_out": scale * jax.random.normal(ks[7], (num_tags, 2 * rnn_size), jnp.float32),
        "b_out": scale * jax.random.normal(ks[8], (num_tags,), jnp.float32),
    }


def reference_forward(word_ids, params, *, rnn_size, num_tags):
    """Pure-JAX f32 reference matching the PyTorch forward (eval-mode dropout)."""
    H = rnn_size
    x = jnp.take(params["embedding"], word_ids, axis=0)

    def step(w_ih, b_ih, b_hh):
        gates = x @ w_ih.T + b_ih + b_hh
        i, f, g, o = (gates[:, 0:H], gates[:, H:2 * H], gates[:, 2 * H:3 * H],
                      gates[:, 3 * H:4 * H])
        c = jax.nn.sigmoid(i) * jnp.tanh(g)
        return jax.nn.sigmoid(o) * jnp.tanh(c)

    h_f = step(params["w_ih_f"], params["b_ih_f"], params["b_hh_f"])
    h_b = step(params["w_ih_b"], params["b_ih_b"], params["b_hh_b"])
    h = jnp.concatenate([h_f, h_b], axis=-1)
    return h @ params["w_out"].T + params["b_out"]


if __name__ == "__main__":
    num_words, num_tags, emb_size, rnn_size = 64, 8, 32, 32
    seq_len = 8

    key = jax.random.PRNGKey(0)
    k_ids, k_params = jax.random.split(key)
    params = make_params(k_params, num_words, num_tags, emb_size, rnn_size)
    word_ids = jax.random.randint(k_ids, (seq_len,), 0, num_words, dtype=jnp.int32)

    kparams = prepare_kernel_params(params, rnn_size=rnn_size, num_tags=num_tags)
    out = tagger_forward(word_ids, kparams, rnn_size=rnn_size, num_tags=num_tags)
    out = jax.block_until_ready(out)

    ref = reference_forward(word_ids, params, rnn_size=rnn_size, num_tags=num_tags)
    assert out.shape == (seq_len, num_tags)
    # bf16 weight path vs f32 reference -> relaxed (but tight-for-bf16) tolerance
    assert jnp.allclose(out, ref, atol=1e-2, rtol=1e-2), float(jnp.max(jnp.abs(out - ref)))
    print("KERNEL_OK")
</pallas_src>

<mosaic_0001>
module attributes {stable_mosaic.version = 11 : i64} {
  func.func @_tagger_kernel(%arg0: i32, %arg1: memref<8x1xi32, #tpu.memory_space<vmem>>, %arg2: memref<64x384xbf16, #tpu.memory_space<vmem>>, %arg3: memref<1x384xf32, #tpu.memory_space<vmem>>, %arg4: memref<128x128xbf16, #tpu.memory_space<vmem>>, %arg5: memref<1x128xf32, #tpu.memory_space<vmem>>, %arg6: memref<8x128xf32, #tpu.memory_space<vmem>>) attributes {dimension_semantics = [#tpu.dimension_semantics<parallel>], iteration_bounds = array<i64: 1>, scalar_prefetch = 0 : i64, scratch_operands = 0 : i64, tpu.core_type = #tpu.core_type<tc>, window_params = [{transform_indices = @transform_0, window_bounds = array<i64: 8, 1>}, {pipeline_mode = #tpu.pipeline_mode<synchronous>, transform_indices = @transform_1, window_bounds = array<i64: 64, 384>}, {pipeline_mode = #tpu.pipeline_mode<synchronous>, transform_indices = @transform_2, window_bounds = array<i64: 1, 384>}, {pipeline_mode = #tpu.pipeline_mode<synchronous>, transform_indices = @transform_3, window_bounds = array<i64: 128, 128>}, {pipeline_mode = #tpu.pipeline_mode<synchronous>, transform_indices = @transform_4, window_bounds = array<i64: 1, 128>}, {transform_indices = @transform_5, window_bounds = array<i64: 8, 128>}]} {
    %c0 = arith.constant 0 : index
    %c0_0 = arith.constant 0 : index
    %0 = vector.load %arg1[%c0, %c0_0] : memref<8x1xi32, #tpu.memory_space<vmem>>, vector<8x1xi32>
    %1 = tpu.iota {dimensions = array<i32: 1>} : vector<8x64xi32>
    %2 = vector.broadcast %0 : vector<8x1xi32> to vector<8x64xi32>
    %3 = arith.cmpi eq, %2, %1 : vector<8x64xi32>
    %4 = arith.extui %3 : vector<8x64xi1> to vector<8x64xi32>
    %5 = arith.sitofp %4 : vector<8x64xi32> to vector<8x64xf32>
    %6 = arith.truncf %5 : vector<8x64xf32> to vector<8x64xbf16>
    %c0_1 = arith.constant 0 : index
    %c0_2 = arith.constant 0 : index
    %7 = vector.load %arg2[%c0_1, %c0_2] : memref<64x384xbf16, #tpu.memory_space<vmem>>, vector<64x384xbf16>
    %cst = arith.constant dense<0.000000e+00> : vector<8x384xf32>
    %8 = tpu.matmul %6, %7, %cst {dimension_numbers = #tpu.dot_dimension_numbers<[1], [0], [0], [1], [0, 0, 1, 1], [], []>} : vector<8x64xbf16>, vector<64x384xbf16>, vector<8x384xf32> -> vector<8x384xf32>
    %c0_3 = arith.constant 0 : index
    %c0_4 = arith.constant 0 : index
    %9 = vector.load %arg3[%c0_3, %c0_4] : memref<1x384xf32, #tpu.memory_space<vmem>>, vector<1x384xf32>
    %10 = vector.broadcast %9 : vector<1x384xf32> to vector<8x384xf32>
    %11 = arith.addf %8, %10 : vector<8x384xf32>
    %12 = vector.extract_strided_slice %11 {offsets = [0, 0], sizes = [8, 128], strides = [1, 1]} : vector<8x384xf32> to vector<8x128xf32>
    %13 = arith.negf %12 : vector<8x128xf32>
    %14 = math.exp %13 : vector<8x128xf32>
    %cst_5 = arith.constant 1.000000e+00 : f32
    %15 = vector.broadcast %cst_5 : f32 to vector<8x128xf32>
    %16 = arith.addf %15, %14 : vector<8x128xf32>
    %17 = arith.divf %15, %16 : vector<8x128xf32>
    %18 = vector.extract_strided_slice %11 {offsets = [0, 128], sizes = [8, 128], strides = [1, 1]} : vector<8x384xf32> to vector<8x128xf32>
    %19 = arith.negf %18 : vector<8x128xf32>
    %20 = math.exp %19 : vector<8x128xf32>
    %cst_6 = arith.constant 1.000000e+00 : f32
    %21 = vector.broadcast %cst_6 : f32 to vector<8x128xf32>
    %22 = arith.addf %21, %20 : vector<8x128xf32>
    %23 = arith.divf %21, %22 : vector<8x128xf32>
    %24 = vector.extract_strided_slice %11 {offsets = [0, 256], sizes = [8, 128], strides = [1, 1]} : vector<8x384xf32> to vector<8x128xf32>
    %25 = math.tanh %24 : vector<8x128xf32>
    %26 = arith.mulf %17, %25 : vector<8x128xf32>
    %27 = math.tanh %26 : vector<8x128xf32>
    %28 = arith.mulf %23, %27 : vector<8x128xf32>
    %29 = arith.truncf %28 : vector<8x128xf32> to vector<8x128xbf16>
    %c0_7 = arith.constant 0 : index
    %c0_8 = arith.constant 0 : index
    %30 = vector.load %arg4[%c0_7, %c0_8] : memref<128x128xbf16, #tpu.memory_space<vmem>>, vector<128x128xbf16>
    %cst_9 = arith.constant dense<0.000000e+00> : vector<8x128xf32>
    %31 = tpu.matmul %29, %30, %cst_9 {dimension_numbers = #tpu.dot_dimension_numbers<[1], [0], [0], [1], [0, 0, 1, 1], [], []>} : vector<8x128xbf16>, vector<128x128xbf16>, vector<8x128xf32> -> vector<8x128xf32>
    %c0_10 = arith.constant 0 : index
    %c0_11 = arith.constant 0 : index
    %32 = vector.load %arg5[%c0_10, %c0_11] : memref<1x128xf32, #tpu.memory_space<vmem>>, vector<1x128xf32>
    %33 = vector.broadcast %32 : vector<1x128xf32> to vector<8x128xf32>
    %34 = arith.addf %31, %33 : vector<8x128xf32>
    %c0_12 = arith.constant 0 : index
    %c0_13 = arith.constant 0 : index
    %35 = vector.load %arg6[%c0_12, %c0_13] : memref<8x128xf32, #tpu.memory_space<vmem>>, vector<8x128xf32>
    tpu.vector_store %arg6[%c0_12, %c0_13], %34 {strides = array<i32>} : memref<8x128xf32, #tpu.memory_space<vmem>>, vector<8x128xf32>,
    return
  }
  func.func @transform_0(%arg0: i32) -> (i32, i32) {
    %c0_i32 = arith.constant 0 : i32
    %c0_i32_0 = arith.constant 0 : i32
    return %arg0, %c0_i32 : i32, i32
  }
  func.func @transform_1(%arg0: i32) -> (i32, i32) {
    %c0_i32 = arith.constant 0 : i32
    %c0_i32_0 = arith.constant 0 : i32
    %c0_i32_1 = arith.constant 0 : i32
    return %c0_i32, %c0_i32_0 : i32, i32
  }
  func.func @transform_2(%arg0: i32) -> (i32, i32) {
    %c0_i32 = arith.constant 0 : i32
    %c0_i32_0 = arith.constant 0 : i32
    %c0_i32_1 = arith.constant 0 : i32
    return %c0_i32, %c0_i32_0 : i32, i32
  }
  func.func @transform_3(%arg0: i32) -> (i32, i32) {
    %c0_i32 = arith.constant 0 : i32
    %c0_i32_0 = arith.constant 0 : i32
    %c0_i32_1 = arith.constant 0 : i32
    return %c0_i32, %c0_i32_0 : i32, i32
  }
  func.func @transform_4(%arg0: i32) -> (i32, i32) {
    %c0_i32 = arith.constant 0 : i32
    %c0_i32_0 = arith.constant 0 : i32
    %c0_i32_1 = arith.constant 0 : i32
    return %c0_i32, %c0_i32_0 : i32, i32
  }
  func.func @transform_5(%arg0: i32) -> (i32, i32) {
    %c0_i32 = arith.constant 0 : i32
    %c0_i32_0 = arith.constant 0 : i32
    return %arg0, %c0_i32 : i32, i32
  }
}

</mosaic_0001>

<llo_original>
// kernel: tpu_custom_call.1
$region0: #{tpu_custom_call.1}
  #allocation0 [shape = 'u32[]', space=smem, size = 0x4, offset = 0x4, fixed_abs, tag = 'smem constant byte address 0x4 - core index']
  #allocation1 [shape = 'u32[72,128]{1,0:T(1,128)}', space=vmem, size = 0x9000, scoped, tag = 'internal scratch']
  %s0 = inlined_call_operand.vmem [shape: s32[8,1], index: 0, kind: input, shape index: {}]
  %s1 = inlined_call_operand.hbm [shape: bf16[64,384], index: 1, kind: input, shape index: {}]
  %s2 = inlined_call_operand.vmem [shape: f32[1,384], index: 2, kind: input, shape index: {}]
  %s3 = inlined_call_operand.hbm [shape: bf16[128,128], index: 3, kind: input, shape index: {}]
  %s4 = inlined_call_operand.vmem [shape: f32[1,128], index: 4, kind: input, shape index: {}]
  %s5 = inlined_call_operand.hbm [shape: f32[8,128], index: 5, kind: output, shape index: {}]
  %s6 = sld [smem:[#allocation0]]
  $region38: #{tpu_custom_call.1} parent=0
    _
  %s8 = ssub.s32 1, %s6
  %s9 = scalar_select 0, %s8, %s6
  $region1: #{tpu_custom_call.1} parent=0
    #allocation2 [shape = 'u8[49152]{0}', space=vmem, size = 0xc000, scoped, tag = 'input window, operand 1, single buffered']
    #allocation3 [shape = 's32[1]{0}', space=sflag, size = 0x4, scoped, tag = 'scoped memory for tpu_custom_call.1']
    #allocation4 [shape = 's32[1]{0}', space=sflag, size = 0x4, scoped, tag = 'scoped memory for tpu_custom_call.1']
    #allocation5 [shape = 'u8[32768]{0}', space=vmem, size = 0x8000, scoped, tag = 'input window, operand 3, single buffered']
    #allocation6 [shape = 's32[1]{0}', space=sflag, size = 0x4, scoped, tag = 'scoped memory for tpu_custom_call.1']
    #allocation7 [shape = 'u8[4096]{0}', space=vmem, size = 0x1000, scoped, tag = 'output window, operand 0, single buffered']
    %10 = vsyncpa [#allocation3], 0
    %11 = vsyncpa [#allocation6], 0
    %12 = vsyncpa [#allocation4], 0
    // Predicated region
    $region2: #{tpu_custom_call.1} parent=1 // pred_check
      _
    $region3: #{tpu_custom_call.1} parent=1 // pred_check_branch
      %14 = sbr.rel (0) target = $region5
    $region4: #{tpu_custom_call.1} parent=1 // pred_region
      _
    $region5: #{tpu_custom_call.1} parent=1 // pred_fallthru
      _
    // Predicated region
    $region6: #{tpu_custom_call.1} parent=1 // pred_check
      _
    $region7: #{tpu_custom_call.1} parent=1 // pred_check_branch
      %16 = sbr.rel (0) target = $region9
    $region8: #{tpu_custom_call.1} parent=1 // pred_region
      %18 = vsyncadd [#allocation3], 0
      %s19 = sshll.u32 %s1, 4
      %s20 = int_to_ptr.hbm [resolvable:$true] %s19
      %s21 = sshll.u32 [#allocation2], 4
      %s22 = int_to_ptr.vmem [resolvable:$true] %s21
      %27 = dma.hbm_to_vmem [thread:$0]  %s20, 1536, %s22, [#allocation3], 192, 192, 12
    $region9: #{tpu_custom_call.1} parent=1 // pred_fallthru
      _
    // Predicated region
    $region10: #{tpu_custom_call.1} parent=1 // pred_check
      _
    $region11: #{tpu_custom_call.1} parent=1 // pred_check_branch
      %29 = sbr.rel (0) target = $region13
    $region12: #{tpu_custom_call.1} parent=1 // pred_region
      _
    $region13: #{tpu_custom_call.1} parent=1 // pred_fallthru
      _
    // Predicated region
    $region14: #{tpu_custom_call.1} parent=1 // pred_check
      _
    $region15: #{tpu_custom_call.1} parent=1 // pred_check_branch
      %31 = sbr.rel (0) target = $region17
    $region16: #{tpu_custom_call.1} parent=1 // pred_region
      %33 = vsyncadd [#allocation6], 0
      %s34 = sshll.u32 %s3, 4
      %s35 = int_to_ptr.hbm [resolvable:$true] %s34
      %s36 = sshll.u32 [#allocation5], 4
      %s37 = int_to_ptr.vmem [resolvable:$true] %s36
      %42 = dma.hbm_to_vmem [thread:$0]  %s35, 1024, %s37, [#allocation6], 64, 64, 4
    $region17: #{tpu_custom_call.1} parent=1 // pred_fallthru
      _
    // Predicated region
    $region18: #{tpu_custom_call.1} parent=1 // pred_check
      _
    $region19: #{tpu_custom_call.1} parent=1 // pred_check_branch
      %44 = sbr.rel (0) target = $region21
    $region20: #{tpu_custom_call.1} parent=1 // pred_region
      _
    $region21: #{tpu_custom_call.1} parent=1 // pred_fallthru
      _
    // Predicated region
    $region22: #{tpu_custom_call.1} parent=1 // pred_check
      _
    $region23: #{tpu_custom_call.1} parent=1 // pred_check_branch
      %46 = sbr.rel (0) target = $region25
    $region24: #{tpu_custom_call.1} parent=1 // pred_region
      %48 = dma.done [#allocation3], 1536
    $region25: #{tpu_custom_call.1} parent=1 // pred_fallthru
      _
    // Predicated region
    $region26: #{tpu_custom_call.1} parent=1 // pred_check
      _
    $region27: #{tpu_custom_call.1} parent=1 // pred_check_branch
      %50 = sbr.rel (0) target = $region29
    $region28: #{tpu_custom_call.1} parent=1 // pred_region
      %52 = dma.done [#allocation6], 1024
    $region29: #{tpu_custom_call.1} parent=1 // pred_fallthru
      _
    %v54 = vld [vmem:[%s0] sm:$0xff]
    %v55 = vlaneseq
    %v56 = vand.u32 %v55, 127
    %57 = vset.pattern.permute.xlu0 0
    %58 = vperm.xlu0 %57, %v54
    %v59 = vpop.permute.xlu0 %58
    %vm60 = vcmp.eq.s32.totalorder %v59, %v56
    %v61 = vsel %vm60, 1, 0
    %v62 = vcvt.s32.f32 %v61
    %v63 = vpack.c.bf16 %v62, %v62
    %v64 = vld [vmem:[#allocation2] sm:$0xff]
    %v65 = vld [vmem:[#allocation2 + $0x8] sm:$0xf]
    %v66 = vld [vmem:[#allocation2 + $0xc] sm:$0xff]
    %v67 = vld [vmem:[#allocation2 + $0x14] sm:$0xf]
    %v68 = vld [vmem:[#allocation2 + $0x18] sm:$0xff]
    %v69 = vld [vmem:[#allocation2 + $0x20] sm:$0xf]
    %v70 = vld [vmem:[#allocation2 + $0x24] sm:$0xff]
    %v71 = vld [vmem:[#allocation2 + $0x2c] sm:$0xf]
    %v72 = vld [vmem:[#allocation2 + $0x30] sm:$0xff]
    %v73 = vld [vmem:[#allocation2 + $0x38] sm:$0xf]
    %v74 = vld [vmem:[#allocation2 + $0x3c] sm:$0xff]
    %v75 = vld [vmem:[#allocation2 + $0x44] sm:$0xf]
    %v76 = vld [vmem:[#allocation2 + $0x48] sm:$0xff]
    %v77 = vld [vmem:[#allocation2 + $0x50] sm:$0xf]
    %v78 = vld [vmem:[#allocation2 + $0x54] sm:$0xff]
    %v79 = vld [vmem:[#allocation2 + $0x5c] sm:$0xf]
    %v80 = vld [vmem:[%s2] sm:$0x7]
    %v82 = vperm.slane %v80, 0
    %v83 = vperm.slane %v80, 1
    %v84 = vperm.slane %v80, 2
    %v104 = vunpack.c.l.b16 %v64
    %v105 = vunpack.c.h.b16 %v64
    %v106 = vunpack.c.l.b16 %v65
    %v107 = vunpack.c.l.b16 %v66
    %v108 = vunpack.c.h.b16 %v66
    %v109 = vunpack.c.l.b16 %v67
    %v110 = vunpack.c.l.b16 %v68
    %v111 = vunpack.c.h.b16 %v68
    %v112 = vunpack.c.l.b16 %v69
    %v113 = vunpack.c.l.b16 %v70
    %v114 = vunpack.c.h.b16 %v70
    %v115 = vunpack.c.l.b16 %v71
    %v116 = vunpack.c.l.b16 %v72
    %v117 = vunpack.c.h.b16 %v72
    %v118 = vunpack.c.l.b16 %v73
    %v119 = vunpack.c.l.b16 %v74
    %v120 = vunpack.c.h.b16 %v74
    %v121 = vunpack.c.l.b16 %v75
    %v122 = vunpack.c.l.b16 %v76
    %v123 = vunpack.c.h.b16 %v76
    %v124 = vunpack.c.l.b16 %v77
    %v125 = vunpack.c.l.b16 %v78
    %v126 = vunpack.c.h.b16 %v78
    %v127 = vunpack.c.l.b16 %v79
    %v128 = vpack.c.b16 %v107, %v104
    %v129 = vpack.c.b16 %v108, %v105
    %v130 = vpack.c.b16 %v109, %v106
    %v131 = vpack.c.b16 %v113, %v110
    %v132 = vpack.c.b16 %v114, %v111
    %v133 = vpack.c.b16 %v115, %v112
    %v134 = vpack.c.b16 %v119, %v116
    %v135 = vpack.c.b16 %v120, %v117
    %v136 = vpack.c.b16 %v121, %v118
    %v137 = vpack.c.b16 %v125, %v122
    %v138 = vpack.c.b16 %v126, %v123
    %v139 = vpack.c.b16 %v127, %v124
    %vm152 = vcmask 523264
    %v154 = vsel %vm152, %v63, 0
    %156 = vmatpush.bf16.msra.mxu0 0
    %157 = vmatpush.bf16.msra.mxu0 0
    %158 = vmatpush.bf16.msra.mxu0 0
    %159 = vmatpush.bf16.msra.mxu0 0
    %160 = vmatpush.bf16.msra.mxu0 %v137
    %161 = vmatpush.bf16.msra.mxu0 %v134
    %162 = vmatpush.bf16.msra.mxu0 %v131
    %163 = vmatpush.bf16.msra.mxu0 %v128
    %164 = vmatmul.bf16.gmra.mxu0 %v154
    %v165 = vpop.f32.mrf.mxu0
    %v166 = vadd.f32 %v82, %v165
    %v167 = vpop.f32.mrf.mxu0
    %168 = vdwg.mxu0
    %169 = vmatpush.bf16.msra.mxu0 0
    %170 = vmatpush.bf16.msra.mxu0 0
    %171 = vmatpush.bf16.msra.mxu0 0
    %172 = vmatpush.bf16.msra.mxu0 0
    %173 = vmatpush.bf16.msra.mxu0 %v138
    %174 = vmatpush.bf16.msra.mxu0 %v135
    %175 = vmatpush.bf16.msra.mxu0 %v132
    %176 = vmatpush.bf16.msra.mxu0 %v129
    %177 = vmatmul.bf16.gmra.mxu0 %v154
    %v178 = vpop.f32.mrf.mxu0
    %v179 = vadd.f32 %v83, %v178
    %v180 = vpop.f32.mrf.mxu0
    %181 = vdwg.mxu0
    %182 = vmatpush.bf16.msra.mxu0 0
    %183 = vmatpush.bf16.msra.mxu0 0
    %184 = vmatpush.bf16.msra.mxu0 0
    %185 = vmatpush.bf16.msra.mxu0 0
    %186 = vmatpush.bf16.msra.mxu0 %v139
    %187 = vmatpush.bf16.msra.mxu0 %v136
    %188 = vmatpush.bf16.msra.mxu0 %v133
    %189 = vmatpush.bf16.msra.mxu0 %v130
    %190 = vmatmul.bf16.gmra.mxu0 %v154
    %v191 = vpop.f32.mrf.mxu0
    %v192 = vadd.f32 %v84, %v191
    %v193 = vpop.f32.mrf.mxu0
    %194 = vdwg.mxu0
    %v195 = vxor.u32 %v166, 2147483648
    %v196 = vmul.f32 %v195, 1.442695
    %v197 = vpow.pop %v196
    %v198 = vadd.f32 %v197, 1.0
    %v199 = vrcp.pop %v198
    %v200 = vmul.f32 %v198, %v199
    %v201 = vsub.f32 1.0, %v200
    %v202 = vmul.f32 %v199, %v201
    %v203 = vadd.f32 %v199, %v202
    %vm204 = vweird.f32 %v198
    %vm205 = vweird.f32 %v199
    %vm206 = vmor %vm204, %vm205
    %v207 = vsel %vm206, %v199, %v203
    %v208 = vand.u32 2147483647, %v198
    %vm209 = vcmp.eq.f32.partialorder %v208, 8.507059e+37
    %v210 = vand.u32 %v198, 2147483648
    %v211 = vor.u32 1.1754944e-38, %v210
    %v212 = vsel %vm209, %v211, %v207
    %v213 = vmul.f32 1.0, %v212
    %v214 = vxor.u32 %v179, 2147483648
    %v215 = vmul.f32 %v214, 1.442695
    %v216 = vpow.pop %v215
    %v217 = vadd.f32 %v216, 1.0
    %v218 = vrcp.pop %v217
    %v219 = vmul.f32 %v217, %v218
    %v220 = vsub.f32 1.0, %v219
    %v221 = vmul.f32 %v218, %v220
    %v222 = vadd.f32 %v218, %v221
    %vm223 = vweird.f32 %v217
    %vm224 = vweird.f32 %v218
    %vm225 = vmor %vm223, %vm224
    %v226 = vsel %vm225, %v218, %v222
    %v227 = vand.u32 2147483647, %v217
    %vm228 = vcmp.eq.f32.partialorder %v227, 8.507059e+37
    %v229 = vand.u32 %v217, 2147483648
    %v230 = vor.u32 1.1754944e-38, %v229
    %v231 = vsel %vm228, %v230, %v226
    %v232 = vmul.f32 1.0, %v231
    %v233 = vtanh.pop %v192
    %v234 = vmul.f32 %v213, %v233
    %v235 = vtanh.pop %v234
    %v236 = vmul.f32 %v232, %v235
    %v237 = vpack.c.bf16 %v236, %v236
    %v238 = vld [vmem:[#allocation5] sm:$0xf]
    %v239 = vld [vmem:[#allocation5 + $0x4] sm:$0xf]
    %v240 = vld [vmem:[#allocation5 + $0x8] sm:$0xf]
    %v241 = vld [vmem:[#allocation5 + $0xc] sm:$0xf]
    %v242 = vld [vmem:[#allocation5 + $0x10] sm:$0xf]
    %v243 = vld [vmem:[#allocation5 + $0x14] sm:$0xf]
    %v244 = vld [vmem:[#allocation5 + $0x18] sm:$0xf]
    %v245 = vld [vmem:[#allocation5 + $0x1c] sm:$0xf]
    %v246 = vld [vmem:[#allocation5 + $0x20] sm:$0xf]
    %v247 = vld [vmem:[#allocation5 + $0x24] sm:$0xf]
    %v248 = vld [vmem:[#allocation5 + $0x28] sm:$0xf]
    %v249 = vld [vmem:[#allocation5 + $0x2c] sm:$0xf]
    %v250 = vld [vmem:[#allocation5 + $0x30] sm:$0xf]
    %v251 = vld [vmem:[#allocation5 + $0x34] sm:$0xf]
    %v252 = vld [vmem:[#allocation5 + $0x38] sm:$0xf]
    %v253 = vld [vmem:[#allocation5 + $0x3c] sm:$0xf]
    %v254 = vld [vmem:[%s4] sm:$0x1]
    %v256 = vperm.slane %v254, 0
    %v274 = vunpack.c.l.b16 %v238
    %v275 = vunpack.c.l.b16 %v239
    %v276 = vunpack.c.l.b16 %v240
    %v277 = vunpack.c.l.b16 %v241
    %v278 = vunpack.c.l.b16 %v242
    %v279 = vunpack.c.l.b16 %v243
    %v280 = vunpack.c.l.b16 %v244
    %v281 = vunpack.c.l.b16 %v245
    %v282 = vunpack.c.l.b16 %v246
    %v283 = vunpack.c.l.b16 %v247
    %v284 = vunpack.c.l.b16 %v248
    %v285 = vunpack.c.l.b16 %v249
    %v286 = vunpack.c.l.b16 %v250
    %v287 = vunpack.c.l.b16 %v251
    %v288 = vunpack.c.l.b16 %v252
    %v289 = vunpack.c.l.b16 %v253
    %v290 = vpack.c.b16 %v275, %v274
    %v291 = vpack.c.b16 %v277, %v276
    %v292 = vpack.c.b16 %v279, %v278
    %v293 = vpack.c.b16 %v281, %v280
    %v294 = vpack.c.b16 %v283, %v282
    %v295 = vpack.c.b16 %v285, %v284
    %v296 = vpack.c.b16 %v287, %v286
    %v297 = vpack.c.b16 %v289, %v288
    %306 = vmatpush.bf16.msra.mxu0 %v297
    %307 = vmatpush.bf16.msra.mxu0 %v296
    %308 = vmatpush.bf16.msra.mxu0 %v295
    %309 = vmatpush.bf16.msra.mxu0 %v294
    %310 = vmatpush.bf16.msra.mxu0 %v293
    %311 = vmatpush.bf16.msra.mxu0 %v292
    %312 = vmatpush.bf16.msra.mxu0 %v291
    %313 = vmatpush.bf16.msra.mxu0 %v290
    %314 = vmatmul.bf16.gmra.mxu0 %v237
    %v315 = vpop.f32.mrf.mxu0
    %v316 = vadd.f32 %v256, %v315
    %v317 = vpop.f32.mrf.mxu0
    %318 = vdwg.mxu0
    %319 = vst [vmem:[#allocation7] sm:$0xff] %v316
    // Predicated region
    $region30: #{tpu_custom_call.1} parent=1 // pred_check
      _
    $region31: #{tpu_custom_call.1} parent=1 // pred_check_branch
      %321 = sbr.rel (0) target = $region33
    $region32: #{tpu_custom_call.1} parent=1 // pred_region
      %323 = vsyncadd [#allocation4], 0
      %s325 = sshll.u32 [#allocation7], 4
      %s326 = int_to_ptr.vmem [resolvable:$true] %s325
      %s327 = sshll.u32 %s5, 4
      %s328 = int_to_ptr.hbm [resolvable:$true] %s327
      %330 = dma.vmem_to_hbm [thread:$0]  %s326, 128, %s328, [#allocation4]
    $region33: #{tpu_custom_call.1} parent=1 // pred_fallthru
      _
    // Predicated region
    $region34: #{tpu_custom_call.1} parent=1 // pred_check
      _
    $region35: #{tpu_custom_call.1} parent=1 // pred_check_branch
      %332 = sbr.rel (0) target = $region37
    $region36: #{tpu_custom_call.1} parent=1 // pred_region
      %334 = dma.done [#allocation4], 128
    $region37: #{tpu_custom_call.1} parent=1 // pred_fallthru
      _
    %335 = vsyncpa [#allocation3], 1
    %336 = vsyncpa [#allocation6], 1
    %337 = vsyncpa [#allocation4], 1

</llo_original>
